<compile_context>
chip_gen: v7x
topology: tpu7x:2x2x1
jax: 0.10.0
libtpu: 0.0.40
codegen_flags: <defaults>
</compile_context>

<pallas_src>
import functools

import jax
import jax.numpy as jnp
from jax import lax
from jax.experimental import pallas as pl
from jax.experimental.pallas import tpu as pltpu

MAX_FP_ITERS = 50  # max fixed-point iterations inside the implicit layer


# ----------------------------------------------------------------------------
# Fused Pallas kernel (constants beta/gamma/tol baked in via closure)
# ----------------------------------------------------------------------------
def _make_fused_kernel(beta, gamma, tol):
    beta = float(beta)
    gamma = float(gamma)
    tol = float(tol)
    one_minus_beta = 1.0 - beta

    def kernel(x_ref, a_ref, s_ref, w_enc_ref, w_bias_ref, w_igl_ref,
               w_dec_ref, u0_ref, out_ref, u_ref):
        # 1) encoder  (dropout is identity in eval mode)
        h = jnp.dot(x_ref[...], w_enc_ref[...],
                    preferred_element_type=jnp.float32)
        # 2) implicit-layer bias term
        b = jnp.dot(h, w_bias_ref[...], preferred_element_type=jnp.float32)

        a = a_ref[...]
        w_scaled = gamma * w_igl_ref[...]          # loop-invariant, hoisted

        # 3) damped Picard fixed point with tol-based early exit.
        #    u lives in the output ref (VMEM); carry is scalars only.
        u_ref[...] = u0_ref[...]

        def cond(carry):
            it, diff = carry
            return jnp.logical_and(it < MAX_FP_ITERS, diff >= tol)

        def body(carry):
            it, _ = carry
            u = u_ref[...]
            au = jnp.dot(a, u, preferred_element_type=jnp.float32)
            z = jnp.dot(au, w_scaled, preferred_element_type=jnp.float32)
            u_new = one_minus_beta * u + beta * jnp.maximum(z + b, 0.0)
            u_ref[...] = u_new
            diff = jnp.max(jnp.abs(u_new - u))
            return it + 1, diff

        lax.while_loop(cond, body, (jnp.int32(0), jnp.float32(jnp.inf)))

        # 4) ReLU + global_add_pool + decoder (fused epilogue)
        y = jnp.maximum(u_ref[...], 0.0)
        pooled = jnp.dot(s_ref[...], y, preferred_element_type=jnp.float32)
        out_ref[...] = jnp.dot(pooled, w_dec_ref[...],
                               preferred_element_type=jnp.float32)

    return kernel


def _full_spec(shape):
    return pl.BlockSpec(shape, lambda i: (0,) * len(shape))


# ----------------------------------------------------------------------------
# Model
# ----------------------------------------------------------------------------
class PallasModel:
    def __init__(self, in_channels, hidden_channels, out_channels,
                 dropout, phantom_grad, beta_init, gamma_init, tol, key):
        k1, k2, k3, k4 = jax.random.split(key, 4)
        s_enc = 1.0 / jnp.sqrt(in_channels)
        s_hid = 1.0 / jnp.sqrt(hidden_channels)
        # torch.nn.Linear(in, out) weight shape is (out, in); store transposed.
        self.w_enc_t = jax.random.uniform(k1, (in_channels, hidden_channels),
                                          jnp.float32, -s_enc, s_enc)
        self.w_dec_t = jax.random.uniform(k2, (hidden_channels, out_channels),
                                          jnp.float32, -s_hid, s_hid)
        self.w_bias_t = jax.random.uniform(k3, (hidden_channels, hidden_channels),
                                           jnp.float32, -s_hid, s_hid)
        # implicit-layer propagation weight (scaled small for contraction)
        self.w_igl = 0.1 * jax.random.normal(k4, (hidden_channels, hidden_channels),
                                             jnp.float32)
        self.dropout = dropout            # inference: F.dropout is identity
        self.phantom_grad = phantom_grad  # backward-only concept; unused in fwd
        self.hidden = hidden_channels
        self.out_channels = out_channels

        kernel = _make_fused_kernel(beta_init, gamma_init, tol)

        @functools.partial(jax.jit, static_argnames=("num_graphs",))
        def _forward(params, x, edge_index, edge_weight, batch, u0, num_graphs):
            w_enc_t, w_bias_t, w_igl, w_dec_t = params
            x = x.astype(jnp.float32)
            N, C_in = x.shape
            H = w_enc_t.shape[1]
            O = w_dec_t.shape[1]
            G = num_graphs

            # dense adjacency: A[dst, src] = edge_weight (PyG aggregation conv.)
            src, dst = edge_index[0], edge_index[1]
            A = jnp.zeros((N, N), jnp.float32).at[dst, src].add(
                edge_weight.astype(jnp.float32))
            # pooling matrix: S[g, n] = 1 if batch[n] == g
            S = (batch[None, :] == jnp.arange(G, dtype=batch.dtype)[:, None]
                 ).astype(jnp.float32)

            flops = 2 * (N * C_in * H + N * H * H
                         + MAX_FP_ITERS * (N * N * H + N * H * H)
                         + G * N * H + G * H * O)
            bytes_accessed = 4 * (N * C_in + N * N + G * N + C_in * H
                                  + 2 * H * H + H * O + 2 * N * H + G * O)

            fused = pl.pallas_call(
                kernel,
                out_shape=(jax.ShapeDtypeStruct((G, O), jnp.float32),
                           jax.ShapeDtypeStruct((N, H), jnp.float32)),
                grid=(1,),
                in_specs=[
                    _full_spec((N, C_in)),   # x
                    _full_spec((N, N)),      # A
                    _full_spec((G, N)),      # S
                    _full_spec((C_in, H)),   # W_enc^T
                    _full_spec((H, H)),      # W_bias^T
                    _full_spec((H, H)),      # W_igl
                    _full_spec((H, O)),      # W_dec^T
                    _full_spec((N, H)),      # u0
                ],
                out_specs=(_full_spec((G, O)), _full_spec((N, H))),
                input_output_aliases={7: 1},   # u0 buffer -> u* output
                cost_estimate=pl.CostEstimate(flops=flops, transcendentals=0,
                                              bytes_accessed=bytes_accessed),
                compiler_params=pltpu.CompilerParams(
                    dimension_semantics=("arbitrary",)),
            )
            out, u_star = fused(x, A, S, w_enc_t, w_bias_t, w_igl, w_dec_t, u0)
            return out, u_star

        self._forward = _forward

    def __call__(self, x, edge_index, edge_weight, batch, u0=None,
                 num_graphs=None):
        if num_graphs is None:
            # Fallback: host sync.  Pass num_graphs explicitly for best perf.
            num_graphs = int(jax.device_get(batch).max()) + 1
        if u0 is None:
            u0 = jnp.zeros((x.shape[0], self.hidden), jnp.float32)
        params = (self.w_enc_t, self.w_bias_t, self.w_igl, self.w_dec_t)
        return self._forward(params, x, edge_index, edge_weight, batch, u0,
                             num_graphs=num_graphs)


# ----------------------------------------------------------------------------
if __name__ == "__main__":
    key = jax.random.PRNGKey(0)
    k_x, k_e, k_w, k_m = jax.random.split(key, 4)

    N, E = 16, 32                       # nodes, edges
    in_channels, hidden_channels, out_channels = 8, 32, 4

    x = jax.random.normal(k_x, (N, in_channels), jnp.float32)
    edge_index = jax.random.randint(k_e, (2, E), 0, N, jnp.int32)
    edge_weight = 0.1 * jax.random.uniform(k_w, (E,), jnp.float32)
    batch = jnp.concatenate([jnp.zeros(N // 2, jnp.int32),
                             jnp.ones(N - N // 2, jnp.int32)])

    model = PallasModel(in_channels, hidden_channels, out_channels,
                        dropout=0.1, phantom_grad=1,
                        beta_init=0.5, gamma_init=0.8, tol=1e-6, key=k_m)

    out, u0 = model(x, edge_index, edge_weight, batch, num_graphs=2)
    jax.block_until_ready((out, u0))
    assert out.shape == (2, out_channels) and u0.shape == (N, hidden_channels)
    assert bool(jnp.all(jnp.isfinite(out))) and bool(jnp.all(jnp.isfinite(u0)))
    print("KERNEL_OK")
</pallas_src>

<mosaic_0001>
module attributes {stable_mosaic.version = 11 : i64} {
  func.func private @main(%arg0: i32) attributes {dimension_semantics = [#tpu.dimension_semantics<core_parallel>], iteration_bounds = array<i64: 2>, tpu.core_type = #tpu.core_type<sc_scalar_subcore>, window_params = []} {
    return
  }
}

module attributes {stable_mosaic.version = 11 : i64} {
  func.func private @main(%arg0: i32) attributes {dimension_semantics = [#tpu.dimension_semantics<core_parallel>], iteration_bounds = array<i64: 2>, tpu.core_type = #tpu.core_type<sc_scalar_subcore>, window_params = []} {
    return
  }
}

module attributes {stable_mosaic.version = 11 : i64} {
  func.func @kernel(%arg0: i32, %arg1: memref<16x8xf32, #tpu.memory_space<vmem>>, %arg2: memref<16x16xf32, #tpu.memory_space<vmem>>, %arg3: memref<2x16xf32, #tpu.memory_space<vmem>>, %arg4: memref<8x32xf32, #tpu.memory_space<vmem>>, %arg5: memref<32x32xf32, #tpu.memory_space<vmem>>, %arg6: memref<32x32xf32, #tpu.memory_space<vmem>>, %arg7: memref<32x4xf32, #tpu.memory_space<vmem>>, %arg8: memref<16x32xf32, #tpu.memory_space<vmem>>, %arg9: memref<2x4xf32, #tpu.memory_space<vmem>>, %arg10: memref<16x32xf32, #tpu.memory_space<vmem>>) attributes {dimension_semantics = [#tpu.dimension_semantics<arbitrary>], iteration_bounds = array<i64: 1>, scalar_prefetch = 0 : i64, scratch_operands = 0 : i64, tpu.core_type = #tpu.core_type<tc>, window_params = [{pipeline_mode = #tpu.pipeline_mode<synchronous>, transform_indices = @transform_0, window_bounds = array<i64: 16, 8>}, {pipeline_mode = #tpu.pipeline_mode<synchronous>, transform_indices = @transform_1, window_bounds = array<i64: 16, 16>}, {pipeline_mode = #tpu.pipeline_mode<synchronous>, transform_indices = @transform_2, window_bounds = array<i64: 2, 16>}, {pipeline_mode = #tpu.pipeline_mode<synchronous>, transform_indices = @transform_3, window_bounds = array<i64: 8, 32>}, {pipeline_mode = #tpu.pipeline_mode<synchronous>, transform_indices = @transform_4, window_bounds = array<i64: 32, 32>}, {pipeline_mode = #tpu.pipeline_mode<synchronous>, transform_indices = @transform_5, window_bounds = array<i64: 32, 32>}, {pipeline_mode = #tpu.pipeline_mode<synchronous>, transform_indices = @transform_6, window_bounds = array<i64: 32, 4>}, {pipeline_mode = #tpu.pipeline_mode<synchronous>, transform_indices = @transform_7, window_bounds = array<i64: 16, 32>}, {pipeline_mode = #tpu.pipeline_mode<synchronous>, transform_indices = @transform_8, window_bounds = array<i64: 2, 4>}, {pipeline_mode = #tpu.pipeline_mode<synchronous>, transform_indices = @transform_9, window_bounds = array<i64: 16, 32>}]} {
    %c0 = arith.constant 0 : index
    %c0_0 = arith.constant 0 : index
    %0 = vector.load %arg1[%c0, %c0_0] : memref<16x8xf32, #tpu.memory_space<vmem>>, vector<16x8xf32>
    %c0_1 = arith.constant 0 : index
    %c0_2 = arith.constant 0 : index
    %1 = vector.load %arg4[%c0_1, %c0_2] : memref<8x32xf32, #tpu.memory_space<vmem>>, vector<8x32xf32>
    %cst = arith.constant dense<0.000000e+00> : vector<16x32xf32>
    %2 = tpu.matmul %0, %1, %cst {dimension_numbers = #tpu.dot_dimension_numbers<[1], [0], [0], [1], [0, 0, 1, 1], [], []>} : vector<16x8xf32>, vector<8x32xf32>, vector<16x32xf32> -> vector<16x32xf32>
    %c0_3 = arith.constant 0 : index
    %c0_4 = arith.constant 0 : index
    %3 = vector.load %arg5[%c0_3, %c0_4] : memref<32x32xf32, #tpu.memory_space<vmem>>, vector<32x32xf32>
    %cst_5 = arith.constant dense<0.000000e+00> : vector<16x32xf32>
    %4 = tpu.matmul %2, %3, %cst_5 {dimension_numbers = #tpu.dot_dimension_numbers<[1], [0], [0], [1], [0, 0, 1, 1], [], []>} : vector<16x32xf32>, vector<32x32xf32>, vector<16x32xf32> -> vector<16x32xf32>
    %c0_6 = arith.constant 0 : index
    %c0_7 = arith.constant 0 : index
    %5 = vector.load %arg2[%c0_6, %c0_7] : memref<16x16xf32, #tpu.memory_space<vmem>>, vector<16x16xf32>
    %c0_8 = arith.constant 0 : index
    %c0_9 = arith.constant 0 : index
    %6 = vector.load %arg6[%c0_8, %c0_9] : memref<32x32xf32, #tpu.memory_space<vmem>>, vector<32x32xf32>
    %cst_10 = arith.constant 8.000000e-01 : f32
    %7 = vector.broadcast %cst_10 : f32 to vector<32x32xf32>
    %8 = arith.mulf %7, %6 : vector<32x32xf32>
    %c0_11 = arith.constant 0 : index
    %c0_12 = arith.constant 0 : index
    %9 = vector.load %arg8[%c0_11, %c0_12] : memref<16x32xf32, #tpu.memory_space<vmem>>, vector<16x32xf32>
    %c0_13 = arith.constant 0 : index
    %c0_14 = arith.constant 0 : index
    %10 = vector.load %arg10[%c0_13, %c0_14] : memref<16x32xf32, #tpu.memory_space<vmem>>, vector<16x32xf32>
    tpu.vector_store %arg10[%c0_13, %c0_14], %9 {strides = array<i32>} : memref<16x32xf32, #tpu.memory_space<vmem>>, vector<16x32xf32>,
    %c0_i32 = arith.constant 0 : i32
    %cst_15 = arith.constant 0x7F800000 : f32
    %11:2 = scf.while (%arg11 = %c0_i32, %arg12 = %cst_15) : (i32, f32) -> (i32, f32) {
      %c50_i32 = arith.constant 50 : i32
      %20 = arith.cmpi slt, %arg11, %c50_i32 : i32
      %cst_27 = arith.constant 9.99999997E-7 : f32
      %21 = arith.cmpf oge, %arg12, %cst_27 : f32
      %22 = arith.andi %20, %21 : i1
      scf.condition(%22) %arg11, %arg12 : i32, f32
    } do {
    ^bb0(%arg11: i32, %arg12: f32):
      %c0_27 = arith.constant 0 : index
      %c0_28 = arith.constant 0 : index
      %20 = vector.load %arg10[%c0_27, %c0_28] : memref<16x32xf32, #tpu.memory_space<vmem>>, vector<16x32xf32>
      %cst_29 = arith.constant dense<0.000000e+00> : vector<16x32xf32>
      %21 = tpu.matmul %5, %20, %cst_29 {dimension_numbers = #tpu.dot_dimension_numbers<[1], [0], [0], [1], [0, 0, 1, 1], [], []>} : vector<16x16xf32>, vector<16x32xf32>, vector<16x32xf32> -> vector<16x32xf32>
      %cst_30 = arith.constant dense<0.000000e+00> : vector<16x32xf32>
      %22 = tpu.matmul %21, %8, %cst_30 {dimension_numbers = #tpu.dot_dimension_numbers<[1], [0], [0], [1], [0, 0, 1, 1], [], []>} : vector<16x32xf32>, vector<32x32xf32>, vector<16x32xf32> -> vector<16x32xf32>
      %cst_31 = arith.constant 5.000000e-01 : f32
      %23 = vector.broadcast %cst_31 : f32 to vector<16x32xf32>
      %24 = arith.mulf %23, %20 : vector<16x32xf32>
      %25 = arith.addf %22, %4 : vector<16x32xf32>
      %cst_32 = arith.constant 0.000000e+00 : f32
      %26 = vector.broadcast %cst_32 : f32 to vector<16x32xf32>
      %27 = arith.maximumf %25, %26 : vector<16x32xf32>
      %cst_33 = arith.constant 5.000000e-01 : f32
      %28 = vector.broadcast %cst_33 : f32 to vector<16x32xf32>
      %29 = arith.mulf %28, %27 : vector<16x32xf32>
      %30 = arith.addf %24, %29 : vector<16x32xf32>
      %c0_34 = arith.constant 0 : index
      %c0_35 = arith.constant 0 : index
      %31 = vector.load %arg10[%c0_34, %c0_35] : memref<16x32xf32, #tpu.memory_space<vmem>>, vector<16x32xf32>
      tpu.vector_store %arg10[%c0_34, %c0_35], %30 {strides = array<i32>} : memref<16x32xf32, #tpu.memory_space<vmem>>, vector<16x32xf32>,
      %32 = arith.subf %30, %20 : vector<16x32xf32>
      %33 = math.absf %32 : vector<16x32xf32>
      %34 = vector.shape_cast %33 : vector<16x32xf32> to vector<1x16x32xf32>
      %cst_36 = arith.constant dense<0xFF800000> : vector<1xf32>
      %35 = vector.multi_reduction <maximumf>, %34, %cst_36 [1, 2] : vector<1x16x32xf32> to vector<1xf32>
      %36 = vector.shape_cast %35 : vector<1xf32> to vector<1x1x1xf32>
      %37 = vector.extract %36[0, 0, 0] : f32 from vector<1x1x1xf32>
      %c1_i32 = arith.constant 1 : i32
      %38 = arith.addi %arg11, %c1_i32 : i32
      scf.yield %38, %37 : i32, f32
    }
    %c0_16 = arith.constant 0 : index
    %c0_17 = arith.constant 0 : index
    %12 = vector.load %arg10[%c0_16, %c0_17] : memref<16x32xf32, #tpu.memory_space<vmem>>, vector<16x32xf32>
    %cst_18 = arith.constant 0.000000e+00 : f32
    %13 = vector.broadcast %cst_18 : f32 to vector<16x32xf32>
    %14 = arith.maximumf %12, %13 : vector<16x32xf32>
    %c0_19 = arith.constant 0 : index
    %c0_20 = arith.constant 0 : index
    %15 = vector.load %arg3[%c0_19, %c0_20] : memref<2x16xf32, #tpu.memory_space<vmem>>, vector<2x16xf32>
    %cst_21 = arith.constant dense<0.000000e+00> : vector<2x32xf32>
    %16 = tpu.matmul %15, %14, %cst_21 {dimension_numbers = #tpu.dot_dimension_numbers<[1], [0], [0], [1], [0, 0, 1, 1], [], []>} : vector<2x16xf32>, vector<16x32xf32>, vector<2x32xf32> -> vector<2x32xf32>
    %c0_22 = arith.constant 0 : index
    %c0_23 = arith.constant 0 : index
    %17 = vector.load %arg7[%c0_22, %c0_23] : memref<32x4xf32, #tpu.memory_space<vmem>>, vector<32x4xf32>
    %cst_24 = arith.constant dense<0.000000e+00> : vector<2x4xf32>
    %18 = tpu.matmul %16, %17, %cst_24 {dimension_numbers = #tpu.dot_dimension_numbers<[1], [0], [0], [1], [0, 0, 1, 1], [], []>} : vector<2x32xf32>, vector<32x4xf32>, vector<2x4xf32> -> vector<2x4xf32>
    %c0_25 = arith.constant 0 : index
    %c0_26 = arith.constant 0 : index
    %19 = vector.load %arg9[%c0_25, %c0_26] : memref<2x4xf32, #tpu.memory_space<vmem>>, vector<2x4xf32>
    tpu.vector_store %arg9[%c0_25, %c0_26], %18 {strides = array<i32>} : memref<2x4xf32, #tpu.memory_space<vmem>>, vector<2x4xf32>,
    return
  }
  func.func @transform_0(%arg0: i32) -> (i32, i32) {
    %c0_i32 = arith.constant 0 : i32
    %c0_i32_0 = arith.constant 0 : i32
    %c0_i32_1 = arith.constant 0 : i32
    return %c0_i32, %c0_i32_0 : i32, i32
  }
  func.func @transform_1(%arg0: i32) -> (i32, i32) {
    %c0_i32 = arith.constant 0 : i32
    %c0_i32_0 = arith.constant 0 : i32
    %c0_i32_1 = arith.constant 0 : i32
    return %c0_i32, %c0_i32_0 : i32, i32
  }
  func.func @transform_2(%arg0: i32) -> (i32, i32) {
    %c0_i32 = arith.constant 0 : i32
    %c0_i32_0 = arith.constant 0 : i32
    %c0_i32_1 = arith.constant 0 : i32
    return %c0_i32, %c0_i32_0 : i32, i32
  }
  func.func @transform_3(%arg0: i32) -> (i32, i32) {
    %c0_i32 = arith.constant 0 : i32
    %c0_i32_0 = arith.constant 0 : i32
    %c0_i32_1 = arith.constant 0 : i32
    return %c0_i32, %c0_i32_0 : i32, i32
  }
  func.func @transform_4(%arg0: i32) -> (i32, i32) {
    %c0_i32 = arith.constant 0 : i32
    %c0_i32_0 = arith.constant 0 : i32
    %c0_i32_1 = arith.constant 0 : i32
    return %c0_i32, %c0_i32_0 : i32, i32
  }
  func.func @transform_5(%arg0: i32) -> (i32, i32) {
    %c0_i32 = arith.constant 0 : i32
    %c0_i32_0 = arith.constant 0 : i32
    %c0_i32_1 = arith.constant 0 : i32
    return %c0_i32, %c0_i32_0 : i32, i32
  }
  func.func @transform_6(%arg0: i32) -> (i32, i32) {
    %c0_i32 = arith.constant 0 : i32
    %c0_i32_0 = arith.constant 0 : i32
    %c0_i32_1 = arith.constant 0 : i32
    return %c0_i32, %c0_i32_0 : i32, i32
  }
  func.func @transform_7(%arg0: i32) -> (i32, i32) {
    %c0_i32 = arith.constant 0 : i32
    %c0_i32_0 = arith.constant 0 : i32
    %c0_i32_1 = arith.constant 0 : i32
    return %c0_i32, %c0_i32_0 : i32, i32
  }
  func.func @transform_8(%arg0: i32) -> (i32, i32) {
    %c0_i32 = arith.constant 0 : i32
    %c0_i32_0 = arith.constant 0 : i32
    %c0_i32_1 = arith.constant 0 : i32
    return %c0_i32, %c0_i32_0 : i32, i32
  }
  func.func @transform_9(%arg0: i32) -> (i32, i32) {
    %c0_i32 = arith.constant 0 : i32
    %c0_i32_0 = arith.constant 0 : i32
    %c0_i32_1 = arith.constant 0 : i32
    return %c0_i32, %c0_i32_0 : i32, i32
  }
}

</mosaic_0001>

<llo_original>
// kernel: _forward.1
$region0: #{_forward.1}
  #allocation0 [shape = 'u32[]', space=smem, size = 0x4, offset = 0x4, fixed_abs, tag = 'smem constant byte address 0x4 - core index']
  #allocation1 [shape = 'u32[144,128]{1,0:T(1,128)}', space=vmem, size = 0x12000, scoped, tag = 'internal scratch']
  %s0 = inlined_call_operand.vmem [shape: f32[16,8], index: 0, kind: input, shape index: {}]
  %s1 = inlined_call_operand.hbm [shape: f32[16,16], index: 1, kind: input, shape index: {}]
  %s2 = inlined_call_operand.vmem [shape: f32[2,16], index: 2, kind: input, shape index: {}]
  %s3 = inlined_call_operand.vmem [shape: f32[8,32], index: 3, kind: input, shape index: {}]
  %s4 = inlined_call_operand.vmem [shape: f32[32,32], index: 4, kind: input, shape index: {}]
  %s5 = inlined_call_operand.vmem [shape: f32[32,32], index: 5, kind: input, shape index: {}]
  %s6 = inlined_call_operand.vmem [shape: f32[32,4], index: 6, kind: input, shape index: {}]
  %s7 = inlined_call_operand.hbm [shape: f32[16,32], index: 7, kind: input, shape index: {}, may-alias: {7,9}]
  %s8 = inlined_call_operand.hbm [shape: f32[2,4], index: 8, kind: output, shape index: {0}]
  %s9 = inlined_call_operand.hbm [shape: f32[16,32], index: 9, kind: output, shape index: {1}, may-alias: {7,9}]
  %10 = xla_tuple %s8, %s9
  %s11 = sld [smem:[#allocation0]]
  $region65: #{_forward.1} parent=0
    _
  %s13 = ssub.s32 1, %s11
  %s14 = scalar_select 0, %s13, %s11
  $region1: #{_forward.1} parent=0
    #allocation2 [shape = 'u8[8192]{0}', space=vmem, size = 0x2000, scoped, tag = 'input window, operand 1, single buffered']
    #allocation3 [shape = 's32[1]{0}', space=sflag, size = 0x4, scoped, tag = 'scoped memory for _forward.1']
    #allocation4 [shape = 's32[1]{0}', space=sflag, size = 0x4, scoped, tag = 'scoped memory for _forward.1']
    #allocation5 [shape = 'u8[8192]{0}', space=vmem, size = 0x2000, scoped, tag = 'input window, operand 7, single buffered']
    #allocation6 [shape = 's32[1]{0}', space=sflag, size = 0x4, scoped, tag = 'scoped memory for _forward.1']
    #allocation7 [shape = 'u8[1024]{0}', space=vmem, size = 0x400, scoped, tag = 'output window, operand 0, single buffered']
    #allocation8 [shape = 'u8[8192]{0}', space=vmem, size = 0x2000, scoped, tag = 'output window, operand 1, single buffered']
    #allocation9 [shape = 's32[1]{0}', space=sflag, size = 0x4, scoped, tag = 'scoped memory for _forward.1']
    %15 = vsyncpa [#allocation3], 0
    %16 = vsyncpa [#allocation6], 0
    %17 = vsyncpa [#allocation4], 0
    %18 = vsyncpa [#allocation9], 0
    // Predicated region
    $region2: #{_forward.1} parent=1 // pred_check
      _
    $region3: #{_forward.1} parent=1 // pred_check_branch
      %20 = sbr.rel (0) target = $region5
    $region4: #{_forward.1} parent=1 // pred_region
      _
    $region5: #{_forward.1} parent=1 // pred_fallthru
      _
    // Predicated region
    $region6: #{_forward.1} parent=1 // pred_check
      _
    $region7: #{_forward.1} parent=1 // pred_check_branch
      %22 = sbr.rel (0) target = $region9
    $region8: #{_forward.1} parent=1 // pred_region
      %s24 = ssub.s32 256, 256
      %25 = vsyncadd [#allocation3], %s24
      %s26 = sshll.u32 [#allocation2], 4
      %s27 = int_to_ptr.vmem [resolvable:$true] %s26
      %32 = dma.hbm_to_vmem [thread:$0]  %s1, 256, %s27, [#allocation3], 128, 128, 8
    $region9: #{_forward.1} parent=1 // pred_fallthru
      _
    // Predicated region
    $region10: #{_forward.1} parent=1 // pred_check
      _
    $region11: #{_forward.1} parent=1 // pred_check_branch
      %34 = sbr.rel (0) target = $region13
    $region12: #{_forward.1} parent=1 // pred_region
      _
    $region13: #{_forward.1} parent=1 // pred_fallthru
      _
    // Predicated region
    $region14: #{_forward.1} parent=1 // pred_check
      _
    $region15: #{_forward.1} parent=1 // pred_check_branch
      %36 = sbr.rel (0) target = $region17
    $region16: #{_forward.1} parent=1 // pred_region
      _
    $region17: #{_forward.1} parent=1 // pred_fallthru
      _
    // Predicated region
    $region18: #{_forward.1} parent=1 // pred_check
      _
    $region19: #{_forward.1} parent=1 // pred_check_branch
      %38 = sbr.rel (0) target = $region21
    $region20: #{_forward.1} parent=1 // pred_region
      _
    $region21: #{_forward.1} parent=1 // pred_fallthru
      _
    // Predicated region
    $region22: #{_forward.1} parent=1 // pred_check
      _
    $region23: #{_forward.1} parent=1 // pred_check_branch
      %40 = sbr.rel (0) target = $region25
    $region24: #{_forward.1} parent=1 // pred_region
      _
    $region25: #{_forward.1} parent=1 // pred_fallthru
      _
    // Predicated region
    $region26: #{_forward.1} parent=1 // pred_check
      _
    $region27: #{_forward.1} parent=1 // pred_check_branch
      %42 = sbr.rel (0) target = $region29
    $region28: #{_forward.1} parent=1 // pred_region
      _
    $region29: #{_forward.1} parent=1 // pred_fallthru
      _
    // Predicated region
    $region30: #{_forward.1} parent=1 // pred_check
      _
    $region31: #{_forward.1} parent=1 // pred_check_branch
      %44 = sbr.rel (0) target = $region33
    $region32: #{_forward.1} parent=1 // pred_region
      %s46 = ssub.s32 256, 256
      %47 = vsyncadd [#allocation6], %s46
      %s48 = sshll.u32 [#allocation5], 4
      %s49 = int_to_ptr.vmem [resolvable:$true] %s48
      %54 = dma.hbm_to_vmem [thread:$0]  %s7, 256, %s49, [#allocation6], 128, 128, 8
    $region33: #{_forward.1} parent=1 // pred_fallthru
      _
    // Predicated region
    $region34: #{_forward.1} parent=1 // pred_check
      _
    $region35: #{_forward.1} parent=1 // pred_check_branch
      %56 = sbr.rel (0) target = $region37
    $region36: #{_forward.1} parent=1 // pred_region
      %57 = dma.done [#allocation3], 256
    $region37: #{_forward.1} parent=1 // pred_fallthru
      _
    // Predicated region
    $region38: #{_forward.1} parent=1 // pred_check
      _
    $region39: #{_forward.1} parent=1 // pred_check_branch
      %59 = sbr.rel (0) target = $region41
    $region40: #{_forward.1} parent=1 // pred_region
      %60 = dma.done [#allocation6], 256
    $region41: #{_forward.1} parent=1 // pred_fallthru
      _
    %v61 = vld [vmem:[%s0] sm:$0xff]
    %v62 = vld [vmem:[%s0 + $0x8] sm:$0xff]
    %v63 = vld [vmem:[%s3] sm:$0xff]
    %vm64 = vcmask 64512
    %v66 = vsel %vm64, %v61, 0
    %v69 = vsel %vm64, %v62, 0
    %71 = vmatprep.subr.mxu0 0.0
    %72 = vmatpush1.msra.mxu0 %v63
    %73 = vmatprep.subr.mxu0 0.0
    %74 = vmatpush1.msra.mxu0 0.0
    %75 = vmatprep.subr.mxu0 0.0
    %76 = vmatpush1.msra.mxu0 0.0
    %77 = vmatprep.subr.mxu0 0.0
    %78 = vmatpush1.msra.mxu0 0.0
    %79 = vmatprep.subr.mxu0 0.0
    %80 = vmatpush1.msra.mxu0 0.0
    %81 = vmatprep.subr.mxu0 0.0
    %82 = vmatpush1.msra.mxu0 0.0
    %83 = vmatprep.subr.mxu0 0.0
    %84 = vmatpush1.msra.mxu0 0.0
    %85 = vmatprep.subr.mxu0 0.0
    %86 = vmatpush1.msra.mxu0 0.0
    %87 = vmatprep.subr.mxu0 0.0
    %88 = vmatpush1.msra.mxu0 0.0
    %89 = vmatprep.subr.mxu0 0.0
    %90 = vmatpush1.msra.mxu0 0.0
    %91 = vmatprep.subr.mxu0 0.0
    %92 = vmatpush1.msra.mxu0 0.0
    %93 = vmatprep.subr.mxu0 0.0
    %94 = vmatpush1.msra.mxu0 0.0
    %95 = vmatprep.subr.mxu0 0.0
    %96 = vmatpush1.msra.mxu0 0.0
    %97 = vmatprep.subr.mxu0 0.0
    %98 = vmatpush1.msra.mxu0 0.0
    %99 = vmatprep.subr.mxu0 0.0
    %100 = vmatpush1.msra.mxu0 0.0
    %101 = vmatprep.subr.mxu0 0.0
    %102 = vmatpush1.msra.mxu0 0.0
    %103 = vmatprep.subr.mxu0 0.0
    %104 = vmatpush1.msra.mxu0 0.0
    %105 = vmatprep.subr.mxu0 0.0
    %106 = vmatpush1.msra.mxu0 0.0
    %107 = vmatprep.subr.mxu0 0.0
    %108 = vmatpush1.msra.mxu0 0.0
    %109 = vmatprep.subr.mxu0 0.0
    %110 = vmatpush1.msra.mxu0 0.0
    %111 = vmatprep.subr.mxu0 0.0
    %112 = vmatpush1.msra.mxu0 0.0
    %113 = vmatprep.subr.mxu0 0.0
    %114 = vmatpush1.msra.mxu0 0.0
    %115 = vmatprep.subr.mxu0 0.0
    %116 = vmatpush1.msra.mxu0 0.0
    %117 = vmatprep.subr.mxu0 0.0
    %118 = vmatpush1.msra.mxu0 0.0
    %119 = vmatprep.subr.mxu0 0.0
    %120 = vmatpush1.msra.mxu0 0.0
    %121 = vmatprep.subr.mxu0 0.0
    %122 = vmatpush1.msra.mxu0 0.0
    %123 = vmatprep.subr.mxu0 0.0
    %124 = vmatpush1.msra.mxu0 0.0
    %125 = vmatprep.subr.mxu0 0.0
    %126 = vmatpush1.msra.mxu0 0.0
    %127 = vmatprep.subr.mxu0 0.0
    %128 = vmatpush1.msra.mxu0 0.0
    %129 = vmatprep.subr.mxu0 0.0
    %130 = vmatpush1.msra.mxu0 0.0
    %131 = vmatprep.subr.mxu0 0.0
    %132 = vmatpush1.msra.mxu0 0.0
    %133 = vmatprep.subr.mxu0 0.0
    %134 = vmatpush1.msra.mxu0 0.0
    %135 = vmatprep.mubr.f32.mxu0 0.0
    %136 = vmatmul.mubr.f32.gmra.mrb[0].mxu0 %v66
    %v137 = vpop.f32.mrb[0].mxu0
    %v138 = vadd.f32 0.0, %v137
    %v139 = vpop.f32.mrb[0].mxu0
    %140 = vmatprep.mubr.f32.mxu0 0.0
    %141 = vmatmul.mubr.f32.gmra.mrb[0].mxu0 %v69
    %v142 = vpop.f32.mrb[0].mxu0
    %v143 = vadd.f32 0.0, %v142
    %v144 = vpop.f32.mrb[0].mxu0
    %145 = vdwg.mxu0
    %v146 = vld [vmem:[%s4] sm:$0xff]
    %v147 = vld [vmem:[%s4 + $0x8] sm:$0xff]
    %v148 = vld [vmem:[%s4 + $0x10] sm:$0xff]
    %v149 = vld [vmem:[%s4 + $0x18] sm:$0xff]
    %vm150 = vcmask 261120
    %v152 = vsel %vm150, %v138, 0
    %v155 = vsel %vm150, %v143, 0
    %157 = vmatprep.subr.mxu0 0.0
    %158 = vmatpush1.msra.mxu0 %v146
    %159 = vmatprep.subr.mxu0 0.0
    %160 = vmatpush1.msra.mxu0 %v147
    %161 = vmatprep.subr.mxu0 0.0
    %162 = vmatpush1.msra.mxu0 %v148
    %163 = vmatprep.subr.mxu0 0.0
    %164 = vmatpush1.msra.mxu0 %v149
    %165 = vmatprep.subr.mxu0 0.0
    %166 = vmatpush1.msra.mxu0 0.0
    %167 = vmatprep.subr.mxu0 0.0
    %168 = vmatpush1.msra.mxu0 0.0
    %169 = vmatprep.subr.mxu0 0.0
    %170 = vmatpush1.msra.mxu0 0.0
    %171 = vmatprep.subr.mxu0 0.0
    %172 = vmatpush1.msra.mxu0 0.0
    %173 = vmatprep.subr.mxu0 0.0
    %174 = vmatpush1.msra.mxu0 0.0
    %175 = vmatprep.subr.mxu0 0.0
    %176 = vmatpush1.msra.mxu0 0.0
    %177 = vmatprep.subr.mxu0 0.0
    %178 = vmatpush1.msra.mxu0 0.0
    %179 = vmatprep.subr.mxu0 0.0
    %180 = vmatpush1.msra.mxu0 0.0
    %181 = vmatprep.subr.mxu0 0.0
    %182 = vmatpush1.msra.mxu0 0.0
    %183 = vmatprep.subr.mxu0 0.0
    %184 = vmatpush1.msra.mxu0 0.0
    %185 = vmatprep.subr.mxu0 0.0
    %186 = vmatpush1.msra.mxu0 0.0
    %187 = vmatprep.subr.mxu0 0.0
    %188 = vmatpush1.msra.mxu0 0.0
    %189 = vmatprep.subr.mxu0 0.0
    %190 = vmatpush1.msra.mxu0 0.0
    %191 = vmatprep.subr.mxu0 0.0
    %192 = vmatpush1.msra.mxu0 0.0
    %193 = vmatprep.subr.mxu0 0.0
    %194 = vmatpush1.msra.mxu0 0.0
    %195 = vmatprep.subr.mxu0 0.0
    %196 = vmatpush1.msra.mxu0 0.0
    %197 = vmatprep.subr.mxu0 0.0
    %198 = vmatpush1.msra.mxu0 0.0
    %199 = vmatprep.subr.mxu0 0.0
    %200 = vmatpush1.msra.mxu0 0.0
    %201 = vmatprep.subr.mxu0 0.0
    %202 = vmatpush1.msra.mxu0 0.0
    %203 = vmatprep.subr.mxu0 0.0
    %204 = vmatpush1.msra.mxu0 0.0
    %205 = vmatprep.subr.mxu0 0.0
    %206 = vmatpush1.msra.mxu0 0.0
    %207 = vmatprep.subr.mxu0 0.0
    %208 = vmatpush1.msra.mxu0 0.0
    %209 = vmatprep.subr.mxu0 0.0
    %210 = vmatpush1.msra.mxu0 0.0
    %211 = vmatprep.subr.mxu0 0.0
    %212 = vmatpush1.msra.mxu0 0.0
    %213 = vmatprep.subr.mxu0 0.0
    %214 = vmatpush1.msra.mxu0 0.0
    %215 = vmatprep.subr.mxu0 0.0
    %216 = vmatpush1.msra.mxu0 0.0
    %217 = vmatprep.subr.mxu0 0.0
    %218 = vmatpush1.msra.mxu0 0.0
    %219 = vmatprep.subr.mxu0 0.0
    %220 = vmatpush1.msra.mxu0 0.0
    %221 = vmatprep.mubr.f32.mxu0 0.0
    %222 = vmatmul.mubr.f32.gmra.mrb[0].mxu0 %v152
    %v223 = vpop.f32.mrb[0].mxu0
    %v224 = vadd.f32 0.0, %v223
    %v225 = vpop.f32.mrb[0].mxu0
    %226 = vmatprep.mubr.f32.mxu0 0.0
    %227 = vmatmul.mubr.f32.gmra.mrb[0].mxu0 %v155
    %v228 = vpop.f32.mrb[0].mxu0
    %v229 = vadd.f32 0.0, %v228
    %v230 = vpop.f32.mrb[0].mxu0
    %231 = vdwg.mxu0
    %v232 = vld [vmem:[#allocation2] sm:$0xff]
    %v233 = vld [vmem:[#allocation2 + $0x8] sm:$0xff]
    %v234 = vld [vmem:[%s5] sm:$0xff]
    %v235 = vld [vmem:[%s5 + $0x8] sm:$0xff]
    %v236 = vld [vmem:[%s5 + $0x10] sm:$0xff]
    %v237 = vld [vmem:[%s5 + $0x18] sm:$0xff]
    %v238 = vmul.f32 %v234, 0.8
    %v239 = vmul.f32 %v235, 0.8
    %v240 = vmul.f32 %v236, 0.8
    %v241 = vmul.f32 %v237, 0.8
    %v242 = vld [vmem:[#allocation5] sm:$0xff]
    %v243 = vld [vmem:[#allocation5 + $0x8] sm:$0xff]
    %244 = vst.msk [vmem:[#allocation8] sm:$0xff] %vm150, %v242
    %245 = vst.msk [vmem:[#allocation8 + $0x8] sm:$0xff] %vm150, %v243
    // While loop
    $region42: #{_forward.1} parent=1 // loop_pre_header
      _
    $region43: #{_forward.1} parent=1 // loop_header
      %s247 = sphi 0, %s446
      %s248 = sphi inf, %s445
      %p249 = scmp.lt.s32.totalorder %s247, 50
      %p250 = scmp.ge.f32.partialorder %s248, 1e-06
      %p251 = pnand %p249, %p250
      %p252 = pneg %p251
    $region44: #{_forward.1} parent=1 // loop_header_branch
      %254 = sbr.rel (%p251) target = $region48
    $region45: #{_forward.1} parent=1 // loop_body
      %v255 = vld [vmem:[#allocation8] sm:$0xff]
      %v256 = vld [vmem:[#allocation8 + $0x8] sm:$0xff]
      %vm257 = vcmask 130048
      %v259 = vsel %vm257, %v232, 0
      %v262 = vsel %vm257, %v233, 0
      %264 = vmatprep.subr.mxu0 0.0
      %265 = vmatpush1.msra.mxu0 %v255
      %266 = vmatprep.subr.mxu0 0.0
      %267 = vmatpush1.msra.mxu0 %v256
      %268 = vmatprep.subr.mxu0 0.0
      %269 = vmatpush1.msra.mxu0 0.0
      %270 = vmatprep.subr.mxu0 0.0
      %271 = vmatpush1.msra.mxu0 0.0
      %272 = vmatprep.subr.mxu0 0.0
      %273 = vmatpush1.msra.mxu0 0.0
      %274 = vmatprep.subr.mxu0 0.0
      %275 = vmatpush1.msra.mxu0 0.0
      %276 = vmatprep.subr.mxu0 0.0
      %277 = vmatpush1.msra.mxu0 0.0
      %278 = vmatprep.subr.mxu0 0.0
      %279 = vmatpush1.msra.mxu0 0.0
      %280 = vmatprep.subr.mxu0 0.0
      %281 = vmatpush1.msra.mxu0 0.0
      %282 = vmatprep.subr.mxu0 0.0
      %283 = vmatpush1.msra.mxu0 0.0
      %284 = vmatprep.subr.mxu0 0.0
      %285 = vmatpush1.msra.mxu0 0.0
      %286 = vmatprep.subr.mxu0 0.0
      %287 = vmatpush1.msra.mxu0 0.0
      %288 = vmatprep.subr.mxu0 0.0
      %289 = vmatpush1.msra.mxu0 0.0
      %290 = vmatprep.subr.mxu0 0.0
      %291 = vmatpush1.msra.mxu0 0.0
      %292 = vmatprep.subr.mxu0 0.0
      %293 = vmatpush1.msra.mxu0 0.0
      %294 = vmatprep.subr.mxu0 0.0
      %295 = vmatpush1.msra.mxu0 0.0
      %296 = vmatprep.subr.mxu0 0.0
      %297 = vmatpush1.msra.mxu0 0.0
      %298 = vmatprep.subr.mxu0 0.0
      %299 = vmatpush1.msra.mxu0 0.0
      %300 = vmatprep.subr.mxu0 0.0
      %301 = vmatpush1.msra.mxu0 0.0
      %302 = vmatprep.subr.mxu0 0.0
      %303 = vmatpush1.msra.mxu0 0.0
      %304 = vmatprep.subr.mxu0 0.0
      %305 = vmatpush1.msra.mxu0 0.0
      %306 = vmatprep.subr.mxu0 0.0
      %307 = vmatpush1.msra.mxu0 0.0
      %308 = vmatprep.subr.mxu0 0.0
      %309 = vmatpush1.msra.mxu0 0.0
      %310 = vmatprep.subr.mxu0 0.0
      %311 = vmatpush1.msra.mxu0 0.0
      %312 = vmatprep.subr.mxu0 0.0
      %313 = vmatpush1.msra.mxu0 0.0
      %314 = vmatprep.subr.mxu0 0.0
      %315 = vmatpush1.msra.mxu0 0.0
      %316 = vmatprep.subr.mxu0 0.0
      %317 = vmatpush1.msra.mxu0 0.0
      %318 = vmatprep.subr.mxu0 0.0
      %319 = vmatpush1.msra.mxu0 0.0
      %320 = vmatprep.subr.mxu0 0.0
      %321 = vmatpush1.msra.mxu0 0.0
      %322 = vmatprep.subr.mxu0 0.0
      %323 = vmatpush1.msra.mxu0 0.0
      %324 = vmatprep.subr.mxu0 0.0
      %325 = vmatpush1.msra.mxu0 0.0
      %326 = vmatprep.subr.mxu0 0.0
      %327 = vmatpush1.msra.mxu0 0.0
      %328 = vmatprep.mubr.f32.mxu0 0.0
      %329 = vmatmul.mubr.f32.gmra.mrb[0].mxu0 %v259
      %v330 = vpop.f32.mrb[0].mxu0
      %v331 = vadd.f32 0.0, %v330
      %v332 = vpop.f32.mrb[0].mxu0
      %333 = vmatprep.mubr.f32.mxu0 0.0
      %334 = vmatmul.mubr.f32.gmra.mrb[0].mxu0 %v262
      %v335 = vpop.f32.mrb[0].mxu0
      %v336 = vadd.f32 0.0, %v335
      %v337 = vpop.f32.mrb[0].mxu0
      %338 = vdwg.mxu0
      %v339 = vmul.f32 %v255, 0.5
      %v340 = vmul.f32 %v256, 0.5
      %v342 = vsel %vm150, %v331, 0
      %v345 = vsel %vm150, %v336, 0
      %347 = vmatprep.subr.mxu0 0.0
      %348 = vmatpush1.msra.mxu0 %v238
      %349 = vmatprep.subr.mxu0 0.0
      %350 = vmatpush1.msra.mxu0 %v239
      %351 = vmatprep.subr.mxu0 0.0
      %352 = vmatpush1.msra.mxu0 %v240
      %353 = vmatprep.subr.mxu0 0.0
      %354 = vmatpush1.msra.mxu0 %v241
      %355 = vmatprep.subr.mxu0 0.0
      %356 = vmatpush1.msra.mxu0 0.0
      %357 = vmatprep.subr.mxu0 0.0
      %358 = vmatpush1.msra.mxu0 0.0
      %359 = vmatprep.subr.mxu0 0.0
      %360 = vmatpush1.msra.mxu0 0.0
      %361 = vmatprep.subr.mxu0 0.0
      %362 = vmatpush1.msra.mxu0 0.0
      %363 = vmatprep.subr.mxu0 0.0
      %364 = vmatpush1.msra.mxu0 0.0
      %365 = vmatprep.subr.mxu0 0.0
      %366 = vmatpush1.msra.mxu0 0.0
      %367 = vmatprep.subr.mxu0 0.0
      %368 = vmatpush1.msra.mxu0 0.0
      %369 = vmatprep.subr.mxu0 0.0
      %370 = vmatpush1.msra.mxu0 0.0
      %371 = vmatprep.subr.mxu0 0.0
      %372 = vmatpush1.msra.mxu0 0.0
      %373 = vmatprep.subr.mxu0 0.0
      %374 = vmatpush1.msra.mxu0 0.0
      %375 = vmatprep.subr.mxu0 0.0
      %376 = vmatpush1.msra.mxu0 0.0
      %377 = vmatprep.subr.mxu0 0.0
      %378 = vmatpush1.msra.mxu0 0.0
      %379 = vmatprep.subr.mxu0 0.0
      %380 = vmatpush1.msra.mxu0 0.0
      %381 = vmatprep.subr.mxu0 0.0
      %382 = vmatpush1.msra.mxu0 0.0
      %383 = vmatprep.subr.mxu0 0.0
      %384 = vmatpush1.msra.mxu0 0.0
      %385 = vmatprep.subr.mxu0 0.0
      %386 = vmatpush1.msra.mxu0 0.0
      %387 = vmatprep.subr.mxu0 0.0
      %388 = vmatpush1.msra.mxu0 0.0
      %389 = vmatprep.subr.mxu0 0.0
      %390 = vmatpush1.msra.mxu0 0.0
      %391 = vmatprep.subr.mxu0 0.0
      %392 = vmatpush1.msra.mxu0 0.0
      %393 = vmatprep.subr.mxu0 0.0
      %394 = vmatpush1.msra.mxu0 0.0
      %395 = vmatprep.subr.mxu0 0.0
      %396 = vmatpush1.msra.mxu0 0.0
      %397 = vmatprep.subr.mxu0 0.0
      %398 = vmatpush1.msra.mxu0 0.0
      %399 = vmatprep.subr.mxu0 0.0
      %400 = vmatpush1.msra.mxu0 0.0
      %401 = vmatprep.subr.mxu0 0.0
      %402 = vmatpush1.msra.mxu0 0.0
      %403 = vmatprep.subr.mxu0 0.0
      %404 = vmatpush1.msra.mxu0 0.0
      %405 = vmatprep.subr.mxu0 0.0
      %406 = vmatpush1.msra.mxu0 0.0
      %407 = vmatprep.subr.mxu0 0.0
      %408 = vmatpush1.msra.mxu0 0.0
      %409 = vmatprep.subr.mxu0 0.0
      %410 = vmatpush1.msra.mxu0 0.0
      %411 = vmatprep.mubr.f32.mxu0 0.0
      %412 = vmatmul.mubr.f32.gmra.mrb[0].mxu0 %v342
      %v413 = vpop.f32.mrb[0].mxu0
      %v414 = vadd.f32 %v224, %v413
      %v415 = vpop.f32.mrb[0].mxu0
      %416 = vmatprep.mubr.f32.mxu0 0.0
      %417 = vmatmul.mubr.f32.gmra.mrb[0].mxu0 %v345
      %v418 = vpop.f32.mrb[0].mxu0
      %v419 = vadd.f32 %v229, %v418
      %v420 = vpop.f32.mrb[0].mxu0
      %421 = vdwg.mxu0
      %v422 = vmax.f32 %v414, 0.0
      %v423 = vmax.f32 %v419, 0.0
      %v424 = vmul.f32 %v422, 0.5
      %v425 = vmul.f32 %v423, 0.5
      %v426 = vadd.f32 %v339, %v424
      %v427 = vadd.f32 %v340, %v425
      %428 = vst.msk [vmem:[#allocation8] sm:$0xff] %vm150, %v426
      %429 = vst.msk [vmem:[#allocation8 + $0x8] sm:$0xff] %vm150, %v427
      %v430 = vsub.f32 %v426, %v255
      %v431 = vsub.f32 %v427, %v256
      %v432 = vand.u32 2147483647, %v430
      %v433 = vand.u32 2147483647, %v431
      %v434 = vsel %vm150, %v432, -inf
      %v435 = vsel %vm150, %v433, -inf
      %v436 = vmax.f32 %v434, %v435
      %437 = vmax.xlane.f32.xlu0 %v436
      %v438 = vpop.xlane.xlu0 %437
      %v439 = vrot.slane %v438, 4
      %v440 = vmax.f32 %v438, %v439
      %v441 = vrot.slane %v440, 2
      %v442 = vmax.f32 %v440, %v441
      %v443 = vrot.slane %v442, 1
      %v444 = vmax.f32 %v442, %v443
      %s445 = vtos %v444
      %s446 = sadd.s32 %s247, 1
    $region46: #{_forward.1} parent=1 // loop_footer
      _
    $region47: #{_forward.1} parent=1 // loop_footer_branch
      %246 = sbr.rel target = $region43
    $region48: #{_forward.1} parent=1 // loop_exit
      _
    %v447 = vld [vmem:[#allocation8] sm:$0xff]
    %v448 = vld [vmem:[#allocation8 + $0x8] sm:$0xff]
    %v449 = vmax.f32 %v447, 0.0
    %v450 = vmax.f32 %v448, 0.0
    %v451 = vld [vmem:[%s2] sm:$0x3]
    %vm452 = vcmask 130048
    %v454 = vsel %vm452, %v451, 0
    %456 = vmatprep.subr.mxu0 0.0
    %457 = vmatpush1.msra.mxu0 %v449
    %458 = vmatprep.subr.mxu0 0.0
    %459 = vmatpush1.msra.mxu0 %v450
    %460 = vmatprep.subr.mxu0 0.0
    %461 = vmatpush1.msra.mxu0 0.0
    %462 = vmatprep.subr.mxu0 0.0
    %463 = vmatpush1.msra.mxu0 0.0
    %464 = vmatprep.subr.mxu0 0.0
    %465 = vmatpush1.msra.mxu0 0.0
    %466 = vmatprep.subr.mxu0 0.0
    %467 = vmatpush1.msra.mxu0 0.0
    %468 = vmatprep.subr.mxu0 0.0
    %469 = vmatpush1.msra.mxu0 0.0
    %470 = vmatprep.subr.mxu0 0.0
    %471 = vmatpush1.msra.mxu0 0.0
    %472 = vmatprep.subr.mxu0 0.0
    %473 = vmatpush1.msra.mxu0 0.0
    %474 = vmatprep.subr.mxu0 0.0
    %475 = vmatpush1.msra.mxu0 0.0
    %476 = vmatprep.subr.mxu0 0.0
    %477 = vmatpush1.msra.mxu0 0.0
    %478 = vmatprep.subr.mxu0 0.0
    %479 = vmatpush1.msra.mxu0 0.0
    %480 = vmatprep.subr.mxu0 0.0
    %481 = vmatpush1.msra.mxu0 0.0
    %482 = vmatprep.subr.mxu0 0.0
    %483 = vmatpush1.msra.mxu0 0.0
    %484 = vmatprep.subr.mxu0 0.0
    %485 = vmatpush1.msra.mxu0 0.0
    %486 = vmatprep.subr.mxu0 0.0
    %487 = vmatpush1.msra.mxu0 0.0
    %488 = vmatprep.subr.mxu0 0.0
    %489 = vmatpush1.msra.mxu0 0.0
    %490 = vmatprep.subr.mxu0 0.0
    %491 = vmatpush1.msra.mxu0 0.0
    %492 = vmatprep.subr.mxu0 0.0
    %493 = vmatpush1.msra.mxu0 0.0
    %494 = vmatprep.subr.mxu0 0.0
    %495 = vmatpush1.msra.mxu0 0.0
    %496 = vmatprep.subr.mxu0 0.0
    %497 = vmatpush1.msra.mxu0 0.0
    %498 = vmatprep.subr.mxu0 0.0
    %499 = vmatpush1.msra.mxu0 0.0
    %500 = vmatprep.subr.mxu0 0.0
    %501 = vmatpush1.msra.mxu0 0.0
    %502 = vmatprep.subr.mxu0 0.0
    %503 = vmatpush1.msra.mxu0 0.0
    %504 = vmatprep.subr.mxu0 0.0
    %505 = vmatpush1.msra.mxu0 0.0
    %506 = vmatprep.subr.mxu0 0.0
    %507 = vmatpush1.msra.mxu0 0.0
    %508 = vmatprep.subr.mxu0 0.0
    %509 = vmatpush1.msra.mxu0 0.0
    %510 = vmatprep.subr.mxu0 0.0
    %511 = vmatpush1.msra.mxu0 0.0
    %512 = vmatprep.subr.mxu0 0.0
    %513 = vmatpush1.msra.mxu0 0.0
    %514 = vmatprep.subr.mxu0 0.0
    %515 = vmatpush1.msra.mxu0 0.0
    %516 = vmatprep.subr.mxu0 0.0
    %517 = vmatpush1.msra.mxu0 0.0
    %518 = vmatprep.subr.mxu0 0.0
    %519 = vmatpush1.msra.mxu0 0.0
    %520 = vmatprep.mubr.f32.mxu0 0.0
    %521 = vmatmul.mubr.f32.gmra.mrb[0].mxu0 %v454
    %v522 = vpop.f32.mrb[0].mxu0
    %v523 = vadd.f32 0.0, %v522
    %v524 = vpop.f32.mrb[0].mxu0
    %525 = vdwg.mxu0
    %v526 = vld [vmem:[%s6] sm:$0xff]
    %v527 = vld [vmem:[%s6 + $0x8] sm:$0xff]
    %v528 = vld [vmem:[%s6 + $0x10] sm:$0xff]
    %v529 = vld [vmem:[%s6 + $0x18] sm:$0xff]
    %v531 = vsel %vm150, %v523, 0
    %533 = vmatprep.subr.mxu0 0.0
    %534 = vmatpush1.msra.mxu0 %v526
    %535 = vmatprep.subr.mxu0 0.0
    %536 = vmatpush1.msra.mxu0 %v527
    %537 = vmatprep.subr.mxu0 0.0
    %538 = vmatpush1.msra.mxu0 %v528
    %539 = vmatprep.subr.mxu0 0.0
    %540 = vmatpush1.msra.mxu0 %v529
    %541 = vmatprep.subr.mxu0 0.0
    %542 = vmatpush1.msra.mxu0 0.0
    %543 = vmatprep.subr.mxu0 0.0
    %544 = vmatpush1.msra.mxu0 0.0
    %545 = vmatprep.subr.mxu0 0.0
    %546 = vmatpush1.msra.mxu0 0.0
    %547 = vmatprep.subr.mxu0 0.0
    %548 = vmatpush1.msra.mxu0 0.0
    %549 = vmatprep.subr.mxu0 0.0
    %550 = vmatpush1.msra.mxu0 0.0
    %551 = vmatprep.subr.mxu0 0.0
    %552 = vmatpush1.msra.mxu0 0.0
    %553 = vmatprep.subr.mxu0 0.0
    %554 = vmatpush1.msra.mxu0 0.0
    %555 = vmatprep.subr.mxu0 0.0
    %556 = vmatpush1.msra.mxu0 0.0
    %557 = vmatprep.subr.mxu0 0.0
    %558 = vmatpush1.msra.mxu0 0.0
    %559 = vmatprep.subr.mxu0 0.0
    %560 = vmatpush1.msra.mxu0 0.0
    %561 = vmatprep.subr.mxu0 0.0
    %562 = vmatpush1.msra.mxu0 0.0
    %563 = vmatprep.subr.mxu0 0.0
    %564 = vmatpush1.msra.mxu0 0.0
    %565 = vmatprep.subr.mxu0 0.0
    %566 = vmatpush1.msra.mxu0 0.0
    %567 = vmatprep.subr.mxu0 0.0
    %568 = vmatpush1.msra.mxu0 0.0
    %569 = vmatprep.subr.mxu0 0.0
    %570 = vmatpush1.msra.mxu0 0.0
    %571 = vmatprep.subr.mxu0 0.0
    %572 = vmatpush1.msra.mxu0 0.0
    %573 = vmatprep.subr.mxu0 0.0
    %574 = vmatpush1.msra.mxu0 0.0
    %575 = vmatprep.subr.mxu0 0.0
    %576 = vmatpush1.msra.mxu0 0.0
    %577 = vmatprep.subr.mxu0 0.0
    %578 = vmatpush1.msra.mxu0 0.0
    %579 = vmatprep.subr.mxu0 0.0
    %580 = vmatpush1.msra.mxu0 0.0
    %581 = vmatprep.subr.mxu0 0.0
    %582 = vmatpush1.msra.mxu0 0.0
    %583 = vmatprep.subr.mxu0 0.0
    %584 = vmatpush1.msra.mxu0 0.0
    %585 = vmatprep.subr.mxu0 0.0
    %586 = vmatpush1.msra.mxu0 0.0
    %587 = vmatprep.subr.mxu0 0.0
    %588 = vmatpush1.msra.mxu0 0.0
    %589 = vmatprep.subr.mxu0 0.0
    %590 = vmatpush1.msra.mxu0 0.0
    %591 = vmatprep.subr.mxu0 0.0
    %592 = vmatpush1.msra.mxu0 0.0
    %593 = vmatprep.subr.mxu0 0.0
    %594 = vmatpush1.msra.mxu0 0.0
    %595 = vmatprep.subr.mxu0 0.0
    %596 = vmatpush1.msra.mxu0 0.0
    %597 = vmatprep.mubr.f32.mxu0 0.0
    %598 = vmatmul.mubr.f32.gmra.mrb[0].mxu0 %v531
    %v599 = vpop.f32.mrb[0].mxu0
    %v600 = vadd.f32 0.0, %v599
    %v601 = vpop.f32.mrb[0].mxu0
    %602 = vdwg.mxu0
    %vm603 = vcmask 25600
    %604 = vst.msk [vmem:[#allocation7] sm:$0x3] %vm603, %v600
    // Predicated region
    $region49: #{_forward.1} parent=1 // pred_check
      _
    $region50: #{_forward.1} parent=1 // pred_check_branch
      %606 = sbr.rel (0) target = $region52
    $region51: #{_forward.1} parent=1 // pred_region
      %s608 = ssub.s32 32, 32
      %609 = vsyncadd [#allocation4], %s608
      %s611 = sshll.u32 [#allocation7], 4
      %s612 = int_to_ptr.vmem [resolvable:$true] %s611
      %614 = dma.vmem_to_hbm [thread:$0]  %s612, 32, %s8, [#allocation4]
    $region52: #{_forward.1} parent=1 // pred_fallthru
      _
    // Predicated region
    $region53: #{_forward.1} parent=1 // pred_check
      _
    $region54: #{_forward.1} parent=1 // pred_check_branch
      %616 = sbr.rel (0) target = $region56
    $region55: #{_forward.1} parent=1 // pred_region
      %s618 = ssub.s32 256, 256
      %619 = vsyncadd [#allocation9], %s618
      %s620 = sshll.u32 [#allocation8], 4
      %s621 = int_to_ptr.vmem [resolvable:$true] %s620
      %626 = dma.vmem_to_hbm [thread:$0]  %s621, 256, %s9, [#allocation9], 128, 128, 8
    $region56: #{_forward.1} parent=1 // pred_fallthru
      _
    // Predicated region
    $region57: #{_forward.1} parent=1 // pred_check
      _
    $region58: #{_forward.1} parent=1 // pred_check_branch
      %628 = sbr.rel (0) target = $region60
    $region59: #{_forward.1} parent=1 // pred_region
      %629 = dma.done [#allocation4], 32
    $region60: #{_forward.1} parent=1 // pred_fallthru
      _
    // Predicated region
    $region61: #{_forward.1} parent=1 // pred_check
      _
    $region62: #{_forward.1} parent=1 // pred_check_branch
      %631 = sbr.rel (0) target = $region64
    $region63: #{_forward.1} parent=1 // pred_region
      %632 = dma.done [#allocation9], 256
    $region64: #{_forward.1} parent=1 // pred_fallthru
      _
    %633 = vsyncpa [#allocation3], 1
    %634 = vsyncpa [#allocation6], 1
    %635 = vsyncpa [#allocation4], 1
    %636 = vsyncpa [#allocation9], 1

</llo_original>
